<compile_context>
chip_gen: v7x
topology: tpu7x:2x2x1
jax: 0.10.0
libtpu: 0.0.40
codegen_flags: <defaults>
</compile_context>

<pallas_src>
import jax
import jax.numpy as jnp
from jax.experimental import pallas as pl
from jax.experimental.pallas import tpu as pltpu

LANES = 128
TARGET_BLOCK_BYTES = 4 * 1024 * 1024   # 4 MiB per block -> 16 MiB with in+out double-buffering
MIN_GRID_STEPS = 2                     # keep >=2 grid steps so both v7x TensorCores engage
VMEM_LIMIT_BYTES = 32 * 1024 * 1024    # explicit, with headroom; <= v7x scoped default


def _cdiv(a: int, b: int) -> int:
    return -(-a // b)


def _round_up(v: int, m: int) -> int:
    return _cdiv(v, m) * m


def _softminus_kernel(scal_ref, x_ref, o_ref):
    # scal_ref: SMEM (2,) f32 = [beta, 1/beta]; x_ref / o_ref: VMEM (block_rows, 128)
    beta = scal_ref[0]
    inv_beta = scal_ref[1]                      # hoisted to wrapper; no in-kernel divide
    x = x_ref[...].astype(jnp.float32)          # in-register upcast (free on VPU)
    z = x * beta
    # Stable softplus(z) = max(z, 0) + log1p(exp(-|z|))  (2 EUP ops / element)
    sp = jnp.maximum(z, 0.0) + jnp.log1p(jnp.exp(-jnp.abs(z)))
    o_ref[...] = (x - sp * inv_beta).astype(o_ref.dtype)


def softminus(x: jax.Array, beta: jax.Array, *, donate: bool = False) -> jax.Array:
    """Elementwise softminus. `x` may be any shape; `beta` has shape (1,).

    donate=True aliases the (reshaped) input buffer onto the output, halving peak
    HBM footprint when the caller no longer needs `x`.
    """
    orig_shape = x.shape
    orig_dtype = x.dtype

    # f32 / bf16 stream through HBM natively; other dtypes go via f32
    # (pays two extra full-array passes for the wrapper casts).
    if orig_dtype in (jnp.float32, jnp.bfloat16):
        io_dtype = orig_dtype
    else:
        io_dtype = jnp.float32

    flat = x.reshape(-1).astype(io_dtype)
    n = flat.shape[0]
    itemsize = jnp.dtype(io_dtype).itemsize
    sublane = 8 if itemsize == 4 else 16

    # Lane-dense layout requires numel % 128 == 0; pad only when necessary.
    padded_n = _round_up(n, LANES)
    needs_pad = padded_n != n
    if needs_pad:
        # Extra HBM pass (see header note); unavoidable for a lane-dense reshape.
        flat = jnp.pad(flat, (0, padded_n - n))
    rows = padded_n // LANES
    x2d = flat.reshape(rows, LANES)

    # 4 MiB blocks (8192 rows f32, 16384 rows bf16), but keep >=2 grid steps for v7x.
    max_block_rows = max(sublane, TARGET_BLOCK_BYTES // (LANES * itemsize))
    if rows <= sublane:
        block_rows = rows          # tiny input: single right-sized block
    else:
        block_rows = min(max_block_rows,
                         _round_up(_cdiv(rows, MIN_GRID_STEPS), sublane))
    grid = (_cdiv(rows, block_rows),)

    # [beta, 1/beta] as SMEM scalars; divide done once on host side of the kernel.
    beta_flat = beta.reshape(-1).astype(jnp.float32)
    scalars = jnp.concatenate([beta_flat, 1.0 / beta_flat])

    out2d = pl.pallas_call(
        _softminus_kernel,
        out_shape=jax.ShapeDtypeStruct((rows, LANES), io_dtype),
        grid_spec=pltpu.PrefetchScalarGridSpec(
            num_scalar_prefetch=0,
            grid=grid,
            in_specs=[
                pl.BlockSpec(memory_space=pltpu.MemorySpace.SMEM),   # [beta, 1/beta]
                pl.BlockSpec((block_rows, LANES), lambda i: (i, 0)),
            ],
            out_specs=pl.BlockSpec((block_rows, LANES), lambda i: (i, 0)),
        ),
        compiler_params=pltpu.CompilerParams(
            dimension_semantics=("parallel",),
            vmem_limit_bytes=VMEM_LIMIT_BYTES,
        ),
        input_output_aliases=({1: 0} if donate else {}),
    )(scalars, x2d)

    out_flat = out2d.reshape(-1)
    if needs_pad:
        out_flat = out_flat[:n]
    return out_flat.reshape(orig_shape).astype(orig_dtype)


def softminus_ref(x, beta):
    # Pure-JAX reference (mathematically identical to x - log(1+exp(b*x))/b).
    b = beta.reshape(()).astype(jnp.float32)
    xf = x.astype(jnp.float32)
    z = b * xf
    sp = jnp.maximum(z, 0.0) + jnp.log1p(jnp.exp(-jnp.abs(z)))
    return (xf - sp / b).astype(x.dtype)


if __name__ == "__main__":
    key = jax.random.PRNGKey(0)

    # NCHW input as the PyTorch module would typically see; 2048 elems -> aligned
    # fast path, rows=16 -> 2 grid steps (both v7x TCs engaged).
    x = jax.random.normal(key, (2, 4, 16, 16), dtype=jnp.float32)
    # Deterministic parameter init, matching nn.Parameter(torch.ones(1)).
    beta = jnp.ones((1,), dtype=jnp.float32)

    y = jax.block_until_ready(softminus(x, beta))
    y_ref = softminus_ref(x, beta)
    assert y.shape == x.shape and y.dtype == x.dtype
    assert jnp.allclose(y, y_ref, atol=1e-5, rtol=1e-5)

    # Ragged size + large magnitudes (exercises pad path and stable softplus).
    x2 = 60.0 * jax.random.normal(jax.random.PRNGKey(1), (3, 5, 7), dtype=jnp.float32)
    y2 = jax.block_until_ready(softminus(x2, beta))
    assert jnp.allclose(y2, softminus_ref(x2, beta), atol=1e-4, rtol=1e-5)
    assert bool(jnp.all(jnp.isfinite(y2)))

    # bf16 native streaming path.
    x3 = jax.random.normal(jax.random.PRNGKey(2), (4, 64), dtype=jnp.bfloat16)
    y3 = jax.block_until_ready(softminus(x3, beta))
    assert y3.dtype == jnp.bfloat16
    assert jnp.allclose(y3.astype(jnp.float32),
                        softminus_ref(x3, beta).astype(jnp.float32),
                        atol=3e-2, rtol=3e-2)

    # Non-default beta.
    beta2 = jnp.array([0.5], dtype=jnp.float32)
    y4 = jax.block_until_ready(softminus(x, beta2))
    assert jnp.allclose(y4, softminus_ref(x, beta2), atol=1e-5, rtol=1e-5)

    print("KERNEL_OK")
</pallas_src>

<mosaic_0001>
module attributes {stable_mosaic.version = 11 : i64} {
  func.func @_softminus_kernel(%arg0: i32, %arg1: memref<2xf32, #tpu.memory_space<smem>>, %arg2: memref<8x128xf32, #tpu.memory_space<vmem>>, %arg3: memref<8x128xf32, #tpu.memory_space<vmem>>) attributes {dimension_semantics = [#tpu.dimension_semantics<parallel>], iteration_bounds = array<i64: 2>, scalar_prefetch = 0 : i64, scratch_operands = 0 : i64, tpu.core_type = #tpu.core_type<tc>, window_params = [{transform_indices = @transform_0, window_bounds = array<i64: 2>}, {transform_indices = @transform_1, window_bounds = array<i64: 8, 128>}, {transform_indices = @transform_2, window_bounds = array<i64: 8, 128>}]} {
    %c0 = arith.constant 0 : index
    %0 = memref.load %arg1[%c0] : memref<2xf32, #tpu.memory_space<smem>>
    %c1 = arith.constant 1 : index
    %1 = memref.load %arg1[%c1] : memref<2xf32, #tpu.memory_space<smem>>
    %c0_0 = arith.constant 0 : index
    %c0_1 = arith.constant 0 : index
    %2 = vector.load %arg2[%c0_0, %c0_1] : memref<8x128xf32, #tpu.memory_space<vmem>>, vector<8x128xf32>
    %3 = vector.broadcast %0 : f32 to vector<8x128xf32>
    %4 = arith.mulf %2, %3 : vector<8x128xf32>
    %cst = arith.constant 0.000000e+00 : f32
    %5 = vector.broadcast %cst : f32 to vector<8x128xf32>
    %6 = arith.maximumf %4, %5 : vector<8x128xf32>
    %7 = math.absf %4 : vector<8x128xf32>
    %cst_2 = arith.constant 0.000000e+00 : f32
    %8 = vector.broadcast %cst_2 : f32 to vector<8x128xf32>
    %9 = arith.subf %8, %7 : vector<8x128xf32>
    %10 = math.exp %9 : vector<8x128xf32>
    %11 = math.log1p %10 : vector<8x128xf32>
    %12 = arith.addf %6, %11 : vector<8x128xf32>
    %13 = vector.broadcast %1 : f32 to vector<8x128xf32>
    %14 = arith.mulf %12, %13 : vector<8x128xf32>
    %15 = arith.subf %2, %14 : vector<8x128xf32>
    %c0_3 = arith.constant 0 : index
    %c0_4 = arith.constant 0 : index
    %16 = vector.load %arg3[%c0_3, %c0_4] : memref<8x128xf32, #tpu.memory_space<vmem>>, vector<8x128xf32>
    tpu.vector_store %arg3[%c0_3, %c0_4], %15 {strides = array<i32>} : memref<8x128xf32, #tpu.memory_space<vmem>>, vector<8x128xf32>,
    return
  }
  func.func @transform_0(%arg0: i32) -> i32 {
    %c0_i32 = arith.constant 0 : i32
    %c0_i32_0 = arith.constant 0 : i32
    return %c0_i32 : i32
  }
  func.func @transform_1(%arg0: i32) -> (i32, i32) {
    %c0_i32 = arith.constant 0 : i32
    %c0_i32_0 = arith.constant 0 : i32
    return %arg0, %c0_i32 : i32, i32
  }
  func.func @transform_2(%arg0: i32) -> (i32, i32) {
    %c0_i32 = arith.constant 0 : i32
    %c0_i32_0 = arith.constant 0 : i32
    return %arg0, %c0_i32 : i32, i32
  }
}

</mosaic_0001>

<llo_original>
// kernel: tpu_custom_call.1
$region0: #{tpu_custom_call.1}
  #allocation0 [shape = 'u32[]', space=smem, size = 0x4, offset = 0x4, fixed_abs, tag = 'smem constant byte address 0x4 - core index']
  #allocation1 [shape = 'u32[144,128]{1,0:T(1,128)}', space=vmem, size = 0x12000, scoped, tag = 'internal scratch']
  %s0 = inlined_call_operand.hbm [shape: f32[2], index: 0, kind: input, shape index: {}]
  %s1 = inlined_call_operand.hbm [shape: f32[16,128], index: 1, kind: input, shape index: {}]
  %s2 = inlined_call_operand.hbm [shape: f32[16,128], index: 2, kind: output, shape index: {}]
  %s3 = sld [smem:[#allocation0]]
  $region49: #{tpu_custom_call.1} parent=0
    _
  %s5 = ssub.s32 1, %s3
  %s6 = scalar_select 0, %s5, %s3
  $region1: #{tpu_custom_call.1} parent=0
    #allocation2 [shape = 'u8[512]{0}', space=smem, size = 0x200, scoped, tag = 'input window, operand 0, single buffered']
    #allocation3 [shape = 's32[2]{0}', space=sflag, size = 0x8, scoped, tag = 'scoped memory for tpu_custom_call.1']
    #allocation4 [shape = 's32[2]{0}', space=sflag, size = 0x8, scoped, tag = 'scoped memory for tpu_custom_call.1']
    #allocation5 [shape = 's32[2]{0}', space=sflag, size = 0x8, scoped, tag = 'scoped memory for tpu_custom_call.1']
    #allocation6 [shape = 'u8[8192]{0}', space=vmem, size = 0x2000, scoped, tag = 'input window, operand 1']
    #allocation7 [shape = 'u8[8192]{0}', space=vmem, size = 0x2000, scoped, tag = 'output window, operand 0']
    %7 = vsyncpa [#allocation5], 0
    %8 = vsyncpa [#allocation3], 0
    %s9 = scalar_lea.sflag [#allocation3], 1
    %10 = vsyncpa %s9, 0
    %11 = vsyncpa [#allocation4], 0
    %s12 = scalar_lea.sflag [#allocation4], 1
    %13 = vsyncpa %s12, 0
    loop: start=0, step=1, limit=4
    $region2: #{tpu_custom_call.1} parent=1 // loop_pre_header
      _
    $region3: #{tpu_custom_call.1} parent=1 // loop_header
      %s15 = sphi 0, %s19
      %p16 = scmp.ge.s32.totalorder %s15, 4
      %s23 = sphi 0, %s23
      %s25 = sphi 0, %s23
      %s26 = sphi 0, %s25
      %s40 = sphi 0, %s26
      %s46 = sphi 0, %s48
      %s49 = sphi 0, %s46
      %s50 = sphi 0, %s49
      %s66 = sphi 0, %s50
      %s72 = sphi 0, %s74
      %s75 = sphi 0, %s72
      %s76 = sphi 0, %s75
      %s92 = sphi 0, %s76
    $region4: #{tpu_custom_call.1} parent=1 // loop_header_branch
      %18 = sbr.rel (%p16) target = $region8
    $region5: #{tpu_custom_call.1} parent=1 // loop_body
      %s20 = ssub.s32 %s15, 1
      %s21 = ssub.s32 %s15, 2
      %s22 = sadd.s32 %s15, 1
      %s24 = sadd.s32 %s23, 1
      %p27 = scmp.eq.s32.totalorder %s15, 1
      %p28 = scmp.ne.s32.totalorder %s23, %s25
      %p29 = scmp.eq.s32.totalorder %s15, 0
      %p30 = por %p28, %p29
      %p31 = scmp.ne.s32.totalorder %s23, %s25
      %p32 = scmp.eq.s32.totalorder %s20, 1
      %p33 = por %p31, %p32
      %p34 = scmp.ne.s32.totalorder %s25, %s26
      %p35 = scmp.eq.s32.totalorder %s20, 0
      %p36 = por %p34, %p35
      %p37 = scmp.ne.s32.totalorder %s25, %s26
      %p38 = scmp.eq.s32.totalorder %s21, 1
      %p39 = por %p37, %p38
      %p41 = scmp.ne.s32.totalorder %s26, %s40
      %p42 = scmp.eq.s32.totalorder %s21, 0
      %p43 = por %p41, %p42
      %s44 = ssub.s32 %s15, %s22
      %p45 = scmp.eq.s32.totalorder %s44, 0
      %s47 = sadd.s32 %s46, 1
      %s48 = scalar_select %p45, %s46, %s47
      %p51 = pneg %p45
      %p52 = scmp.eq.s32.totalorder %s15, 1
      %p53 = por %p51, %p52
      %p54 = scmp.ne.s32.totalorder %s46, %s49
      %p55 = scmp.eq.s32.totalorder %s15, 0
      %p56 = por %p54, %p55
      %p57 = scmp.ne.s32.totalorder %s46, %s49
      %p58 = scmp.eq.s32.totalorder %s20, 1
      %p59 = por %p57, %p58
      %p60 = scmp.ne.s32.totalorder %s49, %s50
      %p61 = scmp.eq.s32.totalorder %s20, 0
      %p62 = por %p60, %p61
      %p63 = scmp.ne.s32.totalorder %s49, %s50
      %p64 = scmp.eq.s32.totalorder %s21, 1
      %p65 = por %p63, %p64
      %p67 = scmp.ne.s32.totalorder %s50, %s66
      %p68 = scmp.eq.s32.totalorder %s21, 0
      %p69 = por %p67, %p68
      %s70 = ssub.s32 %s15, %s22
      %p71 = scmp.eq.s32.totalorder %s70, 0
      %s73 = sadd.s32 %s72, 1
      %s74 = scalar_select %p71, %s72, %s73
      %p77 = pneg %p71
      %p78 = scmp.eq.s32.totalorder %s15, 1
      %p79 = por %p77, %p78
      %p80 = scmp.ne.s32.totalorder %s72, %s75
      %p81 = scmp.eq.s32.totalorder %s15, 0
      %p82 = por %p80, %p81
      %p83 = scmp.ne.s32.totalorder %s72, %s75
      %p84 = scmp.eq.s32.totalorder %s20, 1
      %p85 = por %p83, %p84
      %p86 = scmp.ne.s32.totalorder %s75, %s76
      %p87 = scmp.eq.s32.totalorder %s20, 0
      %p88 = por %p86, %p87
      %p89 = scmp.ne.s32.totalorder %s75, %s76
      %p90 = scmp.eq.s32.totalorder %s21, 1
      %p91 = por %p89, %p90
      %p93 = scmp.ne.s32.totalorder %s76, %s92
      %p94 = scmp.eq.s32.totalorder %s21, 0
      %p95 = por %p93, %p94
      %p96 = scmp.le.s32.totalorder 1, %s15
      %p97 = scmp.lt.s32.totalorder %s15, 3
      %p98 = pnand %p96, %p97
      %p99 = pneg %p98
      // Predicated region
      $region9: #{tpu_custom_call.1} parent=5 // pred_check
        _
      $region10: #{tpu_custom_call.1} parent=5 // pred_check_branch
        %101 = sbr.rel (%p98) target = $region12
      $region11: #{tpu_custom_call.1} parent=5 // pred_region
        %s102 = ssub.s32 %s15, 1
        // Predicated region
        $region13: #{tpu_custom_call.1} parent=11 // pred_check
          %p103 = pneg %p36
        $region14: #{tpu_custom_call.1} parent=11 // pred_check_branch
          %105 = sbr.rel (%p103) target = $region16
        $region15: #{tpu_custom_call.1} parent=11 // pred_region
          %s107 = ssub.s32 16, 16
          %108 = vsyncadd [#allocation5], %s107
          %111 = dma.hbm_to_smem %s0, 16, [#allocation2], [#allocation5]
        $region16: #{tpu_custom_call.1} parent=11 // pred_fallthru
          _
      $region12: #{tpu_custom_call.1} parent=5 // pred_fallthru
        _
      %p112 = scmp.lt.s32.totalorder %s15, 2
      // Predicated region
      $region17: #{tpu_custom_call.1} parent=5 // pred_check
        %p113 = pneg %p112
      $region18: #{tpu_custom_call.1} parent=5 // pred_check_branch
        %115 = sbr.rel (%p113) target = $region20
      $region19: #{tpu_custom_call.1} parent=5 // pred_region
        // Predicated region
        $region21: #{tpu_custom_call.1} parent=19 // pred_check
          %p116 = pneg %p56
        $region22: #{tpu_custom_call.1} parent=19 // pred_check_branch
          %118 = sbr.rel (%p116) target = $region24
        $region23: #{tpu_custom_call.1} parent=19 // pred_region
          %s119 = sand.u32 %s46, 1
          %s120 = scalar_lea.sflag [#allocation3], %s119
          %s121 = sand.u32 %s46, 1
          %s122 = smul.addr %s121, 8
          %s123 = scalar_lea.vmem [#allocation6], %s122
          %s125 = ssub.s32 128, 128
          %126 = vsyncadd %s120, %s125
          %s127 = smul.addr %s15, 128
          %s128 = scalar_lea.hbm %s1, %s127
          %s130 = sshll.u32 %s123, 4
          %s131 = int_to_ptr.vmem [resolvable:$true] %s130
          %133 = dma.hbm_to_vmem [thread:$0]  %s128, 128, %s131, %s120
        $region24: #{tpu_custom_call.1} parent=19 // pred_fallthru
          _
      $region20: #{tpu_custom_call.1} parent=5 // pred_fallthru
        _
      %p134 = scmp.le.s32.totalorder 1, %s15
      %p135 = scmp.lt.s32.totalorder %s15, 3
      %p136 = pnand %p134, %p135
      %p137 = pneg %p136
      // Predicated region
      $region25: #{tpu_custom_call.1} parent=5 // pred_check
        _
      $region26: #{tpu_custom_call.1} parent=5 // pred_check_branch
        %139 = sbr.rel (%p136) target = $region28
      $region27: #{tpu_custom_call.1} parent=5 // pred_region
        %s140 = ssub.s32 %s15, 1
        // Predicated region
        $region29: #{tpu_custom_call.1} parent=27 // pred_check
          %p141 = pneg %p36
        $region30: #{tpu_custom_call.1} parent=27 // pred_check_branch
          %143 = sbr.rel (%p141) target = $region32
        $region31: #{tpu_custom_call.1} parent=27 // pred_region
          %144 = dma.done [#allocation5], 16
        $region32: #{tpu_custom_call.1} parent=27 // pred_fallthru
          _
        %s145 = sand.u32 %s49, 1
        %s146 = scalar_lea.sflag [#allocation3], %s145
        %s147 = sand.u32 %s49, 1
        %s148 = smul.addr %s147, 8
        %s149 = scalar_lea.vmem [#allocation6], %s148
        // Predicated region
        $region33: #{tpu_custom_call.1} parent=27 // pred_check
          %p150 = pneg %p62
        $region34: #{tpu_custom_call.1} parent=27 // pred_check_branch
          %152 = sbr.rel (%p150) target = $region36
        $region35: #{tpu_custom_call.1} parent=27 // pred_region
          %153 = dma.done %s146, 128
        $region36: #{tpu_custom_call.1} parent=27 // pred_fallthru
          _
        %154 = sfence
        %p155 = pneg %p36
        %p156 = pneg %p33
        %s157 = sand.u32 %s49, 1
        %s158 = scalar_lea.sflag [#allocation3], %s157
        %s159 = sand.u32 %s49, 1
        %s160 = smul.addr %s159, 8
        %s161 = scalar_lea.vmem [#allocation6], %s160
        %p162 = pneg %p62
        %p163 = pneg %p59
        %p164 = pneg %p88
        %p165 = pneg %p85
        %s166 = sand.u32 %s75, 1
        %s167 = scalar_lea.sflag [#allocation4], %s166
        %s168 = sand.u32 %s75, 1
        %s169 = smul.addr %s168, 8
        %s170 = scalar_lea.vmem [#allocation7], %s169
        %s171 = sld [smem:[#allocation2]]
        %s172 = sld [smem:[#allocation2 + $0x1]]
        %v173 = vld [vmem:[%s149] sm:$0xff]
        %v174 = vstv %s171
        %v175 = vmul.f32 %v173, %v174
        %v176 = vmax.f32 %v175, 0.0
        %v177 = vand.u32 2147483647, %v175
        %v178 = vsub.f32 0.0, %v177
        %v179 = vmul.f32 %v178, 1.442695
        %v180 = vpow.pop %v179
        %v181 = vadd.f32 %v180, 1.0
        %v182 = vlog2.pop %v181
        %v183 = vmul.f32 %v182, 0.6931472
        %v184 = vmul.f32 -0.5, %v180
        %v185 = vadd.f32 %v184, 1.0
        %v186 = vmul.f32 %v185, %v180
        %v187 = vand.u32 2147483647, %v180
        %vm188 = vcmp.lt.f32.partialorder %v187, 0.0004427343
        %v189 = vsel %vm188, %v186, %v183
        %v190 = vadd.f32 %v176, %v189
        %v191 = vstv %s172
        %v192 = vmul.f32 %v190, %v191
        %v193 = vsub.f32 %v173, %v192
        %194 = vst [vmem:[%s170] sm:$0xff] %v193
        %s195 = sand.u32 %s75, 1
        %s196 = scalar_lea.sflag [#allocation4], %s195
        %s197 = sand.u32 %s75, 1
        %s198 = smul.addr %s197, 8
        %s199 = scalar_lea.vmem [#allocation7], %s198
        // Predicated region
        $region37: #{tpu_custom_call.1} parent=27 // pred_check
          %p200 = pneg %p85
        $region38: #{tpu_custom_call.1} parent=27 // pred_check_branch
          %202 = sbr.rel (%p200) target = $region40
        $region39: #{tpu_custom_call.1} parent=27 // pred_region
          %s204 = ssub.s32 128, 128
          %205 = vsyncadd %s196, %s204
          %s206 = smul.addr %s20, 128
          %s207 = scalar_lea.hbm %s2, %s206
          %s209 = sshll.u32 %s199, 4
          %s210 = int_to_ptr.vmem [resolvable:$true] %s209
          %212 = dma.vmem_to_hbm [thread:$0]  %s210, 128, %s207, %s196
        $region40: #{tpu_custom_call.1} parent=27 // pred_fallthru
          _
      $region28: #{tpu_custom_call.1} parent=5 // pred_fallthru
        _
      %p213 = scmp.le.s32.totalorder 2, %s15
      // Predicated region
      $region41: #{tpu_custom_call.1} parent=5 // pred_check
        %p214 = pneg %p213
      $region42: #{tpu_custom_call.1} parent=5 // pred_check_branch
        %216 = sbr.rel (%p214) target = $region44
      $region43: #{tpu_custom_call.1} parent=5 // pred_region
        %s217 = ssub.s32 %s15, 2
        // Predicated region
        $region45: #{tpu_custom_call.1} parent=43 // pred_check
          %p218 = pneg %p91
        $region46: #{tpu_custom_call.1} parent=43 // pred_check_branch
          %220 = sbr.rel (%p218) target = $region48
        $region47: #{tpu_custom_call.1} parent=43 // pred_region
          %s221 = sand.u32 %s76, 1
          %s222 = scalar_lea.sflag [#allocation4], %s221
          %s223 = sand.u32 %s76, 1
          %s224 = smul.addr %s223, 8
          %s225 = scalar_lea.vmem [#allocation7], %s224
          %226 = dma.done %s222, 128
        $region48: #{tpu_custom_call.1} parent=43 // pred_fallthru
          _
      $region44: #{tpu_custom_call.1} parent=5 // pred_fallthru
        _
    $region6: #{tpu_custom_call.1} parent=1 // loop_footer
      %s19 = sadd.s32 1, %s15
    $region7: #{tpu_custom_call.1} parent=1 // loop_footer_branch
      %14 = sbr.rel target = $region3
    $region8: #{tpu_custom_call.1} parent=1 // loop_exit
      _
    %227 = vsyncpa [#allocation3], 1
    %s228 = scalar_lea.sflag [#allocation3], 1
    %229 = vsyncpa %s228, 1
    %230 = vsyncpa [#allocation4], 1
    %s231 = scalar_lea.sflag [#allocation4], 1
    %232 = vsyncpa %s231, 1
    %233 = vsyncpa [#allocation5], 1
    %s234 = scalar_lea.sflag [#allocation5], 1
    %235 = vsyncpa %s234, 1

</llo_original>
